<compile_context>
chip_gen: v7x
topology: tpu7x:2x2x1
jax: 0.10.0
libtpu: 0.0.40
codegen_flags: <defaults>
</compile_context>

<pallas_src>
import functools
from collections import namedtuple

import jax
import jax.numpy as jnp
from jax.experimental import pallas as pl
from jax.experimental.pallas import tpu as pltpu


HIDDEN = 200  # hidden width of the PyTorch module


def _round_up(x, m):
    return ((x + m - 1) // m) * m


Dims = namedtuple("Dims", "DXP HP DHP WL row_offsets row_sizes W_ROWS OUT_L")


def _dims(dx, dh, hidden=HIDDEN):
    DXP = _round_up(dx, 128)          # image-vars dim padded
    HP = _round_up(hidden, 128)       # 200 -> 256
    DHP = _round_up(dh, 128)          # latent dim padded
    WL = max(HP, 2 * DHP, DXP)        # common lane width of the weight slab
    row_sizes = (DXP, HP, HP, DHP, HP, HP)          # padded K of each layer
    offs, acc = [], 0
    for r in row_sizes:
        offs.append(acc)
        acc += r
    OUT_L = 2 * DHP + DXP                            # [ mu | sigma | p ]
    return Dims(DXP, HP, DHP, WL, tuple(offs), row_sizes, acc, OUT_L)


# ----------------------------------------------------------------------------
# Parameter creation (PyTorch nn.Linear semantics, stored [in, out]) + packing
# ----------------------------------------------------------------------------
def init_linear(key, fan_in, fan_out, dtype=jnp.float32):
    """PyTorch nn.Linear default init: U(-1/sqrt(fan_in), 1/sqrt(fan_in))."""
    kw, kb = jax.random.split(key)
    bound = 1.0 / jnp.sqrt(jnp.asarray(fan_in, dtype))
    w = jax.random.uniform(kw, (fan_in, fan_out), dtype, -bound, bound)
    b = jax.random.uniform(kb, (1, fan_out), dtype, -bound, bound)
    return w, b


def make_iwae1_params(key, dim_h1, dim_image_vars, hidden=HIDDEN):
    ks = jax.random.split(key, 7)
    ew1, eb1 = init_linear(ks[0], dim_image_vars, hidden)
    ew2, eb2 = init_linear(ks[1], hidden, hidden)
    wmu, bmu = init_linear(ks[2], hidden, dim_h1)
    wls, bls = init_linear(ks[3], hidden, dim_h1)
    dw1, db1 = init_linear(ks[4], dim_h1, hidden)
    dw2, db2 = init_linear(ks[5], hidden, hidden)
    dw3, db3 = init_linear(ks[6], hidden, dim_image_vars)
    return (ew1, eb1, ew2, eb2, wmu, bmu, wls, bls,
            dw1, db1, dw2, db2, dw3, db3)


def pack_iwae1_params(params, dim_h1, dim_image_vars, hidden=HIDDEN):
    """Pack the 14 Linear params into (bf16 weight slab, f32 bias slab)."""
    (ew1, eb1, ew2, eb2, wmu, bmu, wls, bls,
     dw1, db1, dw2, db2, dw3, db3) = params
    d = _dims(dim_image_vars, dim_h1, hidden)

    def pad_w(w, k_pad, n_pad):
        k, n = w.shape
        return jnp.pad(w, ((0, k_pad - k), (0, n_pad - n)))

    def pad_b(b, n_pad):
        b = jnp.reshape(b, (1, -1))
        return jnp.pad(b, ((0, 0), (0, n_pad - b.shape[1])))

    # Fused mu / logsigma projection: [hidden, 2*DHP]
    w_muls = jnp.concatenate(
        [pad_w(wmu, hidden, d.DHP), pad_w(wls, hidden, d.DHP)], axis=1)
    b_muls = jnp.concatenate([pad_b(bmu, d.DHP), pad_b(bls, d.DHP)], axis=1)

    w_blocks = [
        pad_w(ew1, d.DXP, d.WL),     # layer 0: encoder L1
        pad_w(ew2, d.HP, d.WL),      # layer 1: encoder L2
        pad_w(w_muls, d.HP, d.WL),   # layer 2: fused mu|logsigma
        pad_w(dw1, d.DHP, d.WL),     # layer 3: decoder L1
        pad_w(dw2, d.HP, d.WL),      # layer 4: decoder L2
        pad_w(dw3, d.HP, d.WL),      # layer 5: decoder L3 (-> sigmoid)
    ]
    b_blocks = [pad_b(eb1, d.WL), pad_b(eb2, d.WL), pad_b(b_muls, d.WL),
                pad_b(db1, d.WL), pad_b(db2, d.WL), pad_b(db3, d.WL)]

    w_slab = jnp.concatenate(w_blocks, axis=0).astype(jnp.bfloat16)
    b_slab = jnp.concatenate(b_blocks, axis=1).astype(jnp.float32)
    return w_slab, b_slab


# ----------------------------------------------------------------------------
# Kernel
# ----------------------------------------------------------------------------
def _make_kernel(d: Dims, dx: int, dh: int, bf16_act: bool):
    DXP, DHP, HP, WL = d.DXP, d.DHP, d.HP, d.WL
    OFF = d.row_offsets

    def kernel(x_ref, eps_ref, w_ref, b_ref, out_ref, eps_pad_ref):
        f32, bf16 = jnp.float32, jnp.bfloat16

        def dense(a_bf16, layer, k_rows, n_lanes):
            """a_bf16 [tm, k_rows] @ W[k_rows, n_lanes] + b, f32 accumulate."""
            lo = OFF[layer]
            w = w_ref[lo:lo + k_rows, 0:n_lanes]                  # bf16
            b = b_ref[0:1, layer * WL:layer * WL + n_lanes]       # f32
            return jnp.dot(a_bf16, w, preferred_element_type=f32) + b

        def hidden_tanh(y_f32):
            # bf16 tanh on v6e/v7x (bf16 EUP); f32 tanh on v5e (no bf16 EUP).
            if bf16_act:
                return jnp.tanh(y_f32.astype(bf16))
            return jnp.tanh(y_f32).astype(bf16)

        # Widen eps from its logical dh lanes to DHP lanes inside VMEM.  Pad
        # lanes are zero, and (mu pad = 0, sigma pad = exp(0) = 1) so h1's pad
        # lanes come out exactly 0; they then hit zero-padded decoder weights.
        eps_pad_ref[...] = jnp.zeros_like(eps_pad_ref)
        eps_pad_ref[:, 0:dh] = eps_ref[...]

        # ----- encoder_h1.transform: Linear -> Tanh -> Linear -> Tanh -----
        t = hidden_tanh(dense(x_ref[...].astype(bf16), 0, dx, HP))
        t = hidden_tanh(dense(t, 1, HP, HP))

        # ----- fused fc_mu | fc_logsigma, sigma = exp(logsigma) (f32) -----
        y = dense(t, 2, HP, 2 * DHP)                              # f32 [tm, 2*DHP]
        mu = y[:, 0:DHP]
        sigma = jnp.exp(y[:, DHP:2 * DHP])

        # ----- reparameterization -----
        h1 = mu + sigma * eps_pad_ref[...]                        # f32 [tm, DHP]

        # ----- decoder_x: Linear->Tanh->Linear->Tanh->Linear->Sigmoid -----
        g = hidden_tanh(dense(h1.astype(bf16), 3, DHP, HP))
        g = hidden_tanh(dense(g, 4, HP, HP))
        logits = dense(g, 5, HP, DXP)                             # f32 [tm, DXP]
        # stable sigmoid on the EUP: sigmoid(x) = 0.5*tanh(x/2) + 0.5 (f32)
        p = 0.5 * jnp.tanh(0.5 * logits) + 0.5

        # Lane-dense packed output [ mu | sigma | p ]; every store 128-aligned.
        out_ref[:, 0:DHP] = mu
        out_ref[:, DHP:2 * DHP] = sigma
        out_ref[:, 2 * DHP:2 * DHP + DXP] = p

    return kernel


# ----------------------------------------------------------------------------
# Wrapper
# ----------------------------------------------------------------------------
def _select_tile_m(batch, preferred=512):
    """Multiple-of-8 batch tile; keeps >=2 grid steps whenever batch allows."""
    mp0 = _round_up(max(batch, 1), 8)
    if mp0 <= 8:
        return 8
    if mp0 <= 2 * preferred:
        return _round_up((mp0 + 1) // 2, 8)   # two roughly equal tiles
    return preferred


def _use_bf16_activations():
    """bf16 tanh only on chips with a bf16 VPU/EUP (v6e, v7x, ...)."""
    try:
        kind = jax.devices()[0].device_kind.lower()
    except Exception:  # pragma: no cover
        return True
    return not any(tag in kind for tag in ("v2", "v3", "v4", "v5"))


@functools.partial(jax.jit, static_argnames=("hidden", "tile_m", "bf16_act"))
def iwae1_forward(x, eps, w_slab, b_slab, *, hidden=HIDDEN, tile_m=None,
                  bf16_act=True):
    """Returns ((h1, mu_h1, sigma_h1, eps), p) — same structure as IWAE_1.forward."""
    B, dx = x.shape
    dh = eps.shape[-1]
    d = _dims(dx, dh, hidden)

    tm = int(tile_m) if tile_m is not None else _select_tile_m(B)
    Mp = _round_up(B, tm)

    # No lane padding (blocks use the full logical last dim); only row-pad the
    # batch when it is not a multiple of the tile.
    x_in = x.astype(jnp.float32)
    eps_in = eps.astype(jnp.float32)
    if Mp != B:
        x_in = jnp.pad(x_in, ((0, Mp - B), (0, 0)))
        eps_in = jnp.pad(eps_in, ((0, Mp - B), (0, 0)))

    out = pl.pallas_call(
        _make_kernel(d, dx, dh, bf16_act),
        out_shape=jax.ShapeDtypeStruct((Mp, d.OUT_L), jnp.float32),
        grid=(Mp // tm,),
        in_specs=[
            pl.BlockSpec((tm, dx), lambda i: (i, 0)),             # x tile (unpadded lanes)
            pl.BlockSpec((tm, dh), lambda i: (i, 0)),             # eps tile (unpadded lanes)
            pl.BlockSpec((d.W_ROWS, d.WL), lambda i: (0, 0)),     # weight slab (resident)
            pl.BlockSpec((1, 6 * d.WL), lambda i: (0, 0)),        # bias slab (resident)
        ],
        out_specs=pl.BlockSpec((tm, d.OUT_L), lambda i: (i, 0)),
        scratch_shapes=[pltpu.VMEM((tm, d.DHP), jnp.float32)],    # lane-widened eps
        compiler_params=pltpu.CompilerParams(
            dimension_semantics=("parallel",)),
    )(x_in, eps_in, w_slab, b_slab)

    mu = out[:B, 0:dh]
    sigma = out[:B, d.DHP:d.DHP + dh]
    p = out[:B, 2 * d.DHP:2 * d.DHP + dx]
    # Same f32 FMA the kernel used for the decoder input (bit-identical), so we
    # save 128 f32 output lanes of HBM writeback by recomputing it here.
    h1 = mu + sigma * eps.astype(jnp.float32)
    return (h1, mu, sigma, eps), p


# Pure-JAX reference (f32 everywhere) for a tolerance check.
def iwae1_reference(x, eps, params):
    (ew1, eb1, ew2, eb2, wmu, bmu, wls, bls,
     dw1, db1, dw2, db2, dw3, db3) = params
    t = jnp.tanh(x @ ew1 + eb1)
    t = jnp.tanh(t @ ew2 + eb2)
    mu = t @ wmu + bmu
    sigma = jnp.exp(t @ wls + bls)
    h1 = mu + sigma * eps
    g = jnp.tanh(h1 @ dw1 + db1)
    g = jnp.tanh(g @ dw2 + db2)
    p = jax.nn.sigmoid(g @ dw3 + db3)
    return (h1, mu, sigma, eps), p


def _check(x, eps, params, w_slab, b_slab, bf16_act):
    B, dx = x.shape
    dh = eps.shape[-1]
    (h1, mu_h1, sigma_h1, eps_out), p = iwae1_forward(
        x, eps, w_slab, b_slab, bf16_act=bf16_act)
    jax.block_until_ready((h1, mu_h1, sigma_h1, eps_out, p))

    assert h1.shape == (B, dh)
    assert mu_h1.shape == (B, dh)
    assert sigma_h1.shape == (B, dh)
    assert p.shape == (B, dx)
    assert bool(jnp.all(sigma_h1 > 0))
    assert bool(jnp.all((p > 0) & (p < 1)))

    (h1_r, mu_r, sg_r, _), p_r = iwae1_reference(x, eps, params)
    for got, ref in ((h1, h1_r), (mu_h1, mu_r), (sigma_h1, sg_r), (p, p_r)):
        assert bool(jnp.allclose(got, ref, atol=5e-2, rtol=5e-2))


if __name__ == "__main__":
    # Small, module-consistent shapes: x is flat image vars [B, dim_image_vars].
    dim_image_vars = 64
    dim_h1 = 16

    key = jax.random.PRNGKey(0)
    k_x, k_eps, k_params, k_x2, k_eps2 = jax.random.split(key, 5)

    params = make_iwae1_params(k_params, dim_h1, dim_image_vars, HIDDEN)
    w_slab, b_slab = pack_iwae1_params(params, dim_h1, dim_image_vars, HIDDEN)
    bf16_act = _use_bf16_activations()

    # Case 1: tiny batch (single grid step, no row padding).
    B = 8
    x = jax.random.uniform(k_x, (B, dim_image_vars), jnp.float32)
    # eps ~ N(0,1), matching sigma.data.new(...).normal_() — sampled host-side
    # and passed in for determinism.
    eps = jax.random.normal(k_eps, (B, dim_h1), jnp.float32)
    _check(x, eps, params, w_slab, b_slab, bf16_act)

    # Case 2: batch that exercises adaptive tiling, row padding and a >=2-step
    # "parallel" grid (megacore path on v7x).
    B2 = 40
    x2 = jax.random.uniform(k_x2, (B2, dim_image_vars), jnp.float32)
    eps2 = jax.random.normal(k_eps2, (B2, dim_h1), jnp.float32)
    _check(x2, eps2, params, w_slab, b_slab, bf16_act)

    print("KERNEL_OK")
</pallas_src>

<mosaic_0001>
module attributes {stable_mosaic.version = 11 : i64} {
  func.func @kernel(%arg0: i32, %arg1: memref<8x64xf32, #tpu.memory_space<vmem>>, %arg2: memref<8x16xf32, #tpu.memory_space<vmem>>, %arg3: memref<1280x256xbf16, #tpu.memory_space<vmem>>, %arg4: memref<1x1536xf32, #tpu.memory_space<vmem>>, %arg5: memref<8x384xf32, #tpu.memory_space<vmem>>, %arg6: memref<8x128xf32, #tpu.memory_space<vmem>>) attributes {dimension_semantics = [#tpu.dimension_semantics<parallel>], iteration_bounds = array<i64: 1>, scalar_prefetch = 0 : i64, scratch_operands = 1 : i64, tpu.core_type = #tpu.core_type<tc>, window_params = [{transform_indices = @transform_0, window_bounds = array<i64: 8, 64>}, {transform_indices = @transform_1, window_bounds = array<i64: 8, 16>}, {pipeline_mode = #tpu.pipeline_mode<synchronous>, transform_indices = @transform_2, window_bounds = array<i64: 1280, 256>}, {pipeline_mode = #tpu.pipeline_mode<synchronous>, transform_indices = @transform_3, window_bounds = array<i64: 1, 1536>}, {transform_indices = @transform_4, window_bounds = array<i64: 8, 384>}]} {
    %cst = arith.constant 0.000000e+00 : f32
    %0 = vector.broadcast %cst : f32 to vector<8x128xf32>
    %c0 = arith.constant 0 : index
    %c0_0 = arith.constant 0 : index
    %1 = vector.load %arg6[%c0, %c0_0] : memref<8x128xf32, #tpu.memory_space<vmem>>, vector<8x128xf32>
    tpu.vector_store %arg6[%c0, %c0_0], %0 {strides = array<i32>} : memref<8x128xf32, #tpu.memory_space<vmem>>, vector<8x128xf32>,
    %c0_1 = arith.constant 0 : index
    %c0_2 = arith.constant 0 : index
    %2 = vector.load %arg2[%c0_1, %c0_2] : memref<8x16xf32, #tpu.memory_space<vmem>>, vector<8x16xf32>
    %c0_3 = arith.constant 0 : index
    %c0_4 = arith.constant 0 : index
    %3 = vector.load %arg6[%c0_3, %c0_4] : memref<8x128xf32, #tpu.memory_space<vmem>>, vector<8x16xf32>
    tpu.vector_store %arg6[%c0_3, %c0_4], %2 {strides = array<i32>} : memref<8x128xf32, #tpu.memory_space<vmem>>, vector<8x16xf32>,
    %c0_5 = arith.constant 0 : index
    %c0_6 = arith.constant 0 : index
    %4 = vector.load %arg1[%c0_5, %c0_6] : memref<8x64xf32, #tpu.memory_space<vmem>>, vector<8x64xf32>
    %5 = arith.truncf %4 : vector<8x64xf32> to vector<8x64xbf16>
    %c0_7 = arith.constant 0 : index
    %c0_8 = arith.constant 0 : index
    %6 = vector.load %arg3[%c0_7, %c0_8] : memref<1280x256xbf16, #tpu.memory_space<vmem>>, vector<64x256xbf16>
    %c0_9 = arith.constant 0 : index
    %c0_10 = arith.constant 0 : index
    %7 = vector.load %arg4[%c0_9, %c0_10] : memref<1x1536xf32, #tpu.memory_space<vmem>>, vector<1x256xf32>
    %cst_11 = arith.constant dense<0.000000e+00> : vector<8x256xf32>
    %8 = tpu.matmul %5, %6, %cst_11 {dimension_numbers = #tpu.dot_dimension_numbers<[1], [0], [0], [1], [0, 0, 1, 1], [], []>} : vector<8x64xbf16>, vector<64x256xbf16>, vector<8x256xf32> -> vector<8x256xf32>
    %9 = vector.broadcast %7 : vector<1x256xf32> to vector<8x256xf32>
    %10 = arith.addf %8, %9 : vector<8x256xf32>
    %11 = arith.truncf %10 : vector<8x256xf32> to vector<8x256xbf16>
    %12 = math.tanh %11 : vector<8x256xbf16>
    %c128 = arith.constant 128 : index
    %c0_12 = arith.constant 0 : index
    %13 = vector.load %arg3[%c128, %c0_12] : memref<1280x256xbf16, #tpu.memory_space<vmem>>, vector<256x256xbf16>
    %c0_13 = arith.constant 0 : index
    %c256 = arith.constant 256 : index
    %14 = vector.load %arg4[%c0_13, %c256] : memref<1x1536xf32, #tpu.memory_space<vmem>>, vector<1x256xf32>
    %cst_14 = arith.constant dense<0.000000e+00> : vector<8x256xf32>
    %15 = tpu.matmul %12, %13, %cst_14 {dimension_numbers = #tpu.dot_dimension_numbers<[1], [0], [0], [1], [0, 0, 1, 1], [], []>} : vector<8x256xbf16>, vector<256x256xbf16>, vector<8x256xf32> -> vector<8x256xf32>
    %16 = vector.broadcast %14 : vector<1x256xf32> to vector<8x256xf32>
    %17 = arith.addf %15, %16 : vector<8x256xf32>
    %18 = arith.truncf %17 : vector<8x256xf32> to vector<8x256xbf16>
    %19 = math.tanh %18 : vector<8x256xbf16>
    %c384 = arith.constant 384 : index
    %c0_15 = arith.constant 0 : index
    %20 = vector.load %arg3[%c384, %c0_15] : memref<1280x256xbf16, #tpu.memory_space<vmem>>, vector<256x256xbf16>
    %c0_16 = arith.constant 0 : index
    %c512 = arith.constant 512 : index
    %21 = vector.load %arg4[%c0_16, %c512] : memref<1x1536xf32, #tpu.memory_space<vmem>>, vector<1x256xf32>
    %cst_17 = arith.constant dense<0.000000e+00> : vector<8x256xf32>
    %22 = tpu.matmul %19, %20, %cst_17 {dimension_numbers = #tpu.dot_dimension_numbers<[1], [0], [0], [1], [0, 0, 1, 1], [], []>} : vector<8x256xbf16>, vector<256x256xbf16>, vector<8x256xf32> -> vector<8x256xf32>
    %23 = vector.broadcast %21 : vector<1x256xf32> to vector<8x256xf32>
    %24 = arith.addf %22, %23 : vector<8x256xf32>
    %25 = vector.extract_strided_slice %24 {offsets = [0, 0], sizes = [8, 128], strides = [1, 1]} : vector<8x256xf32> to vector<8x128xf32>
    %26 = vector.extract_strided_slice %24 {offsets = [0, 128], sizes = [8, 128], strides = [1, 1]} : vector<8x256xf32> to vector<8x128xf32>
    %27 = math.exp %26 : vector<8x128xf32>
    %c0_18 = arith.constant 0 : index
    %c0_19 = arith.constant 0 : index
    %28 = vector.load %arg6[%c0_18, %c0_19] : memref<8x128xf32, #tpu.memory_space<vmem>>, vector<8x128xf32>
    %29 = arith.mulf %27, %28 : vector<8x128xf32>
    %30 = arith.addf %25, %29 : vector<8x128xf32>
    %31 = arith.truncf %30 : vector<8x128xf32> to vector<8x128xbf16>
    %c640 = arith.constant 640 : index
    %c0_20 = arith.constant 0 : index
    %32 = vector.load %arg3[%c640, %c0_20] : memref<1280x256xbf16, #tpu.memory_space<vmem>>, vector<128x256xbf16>
    %c0_21 = arith.constant 0 : index
    %c768 = arith.constant 768 : index
    %33 = vector.load %arg4[%c0_21, %c768] : memref<1x1536xf32, #tpu.memory_space<vmem>>, vector<1x256xf32>
    %cst_22 = arith.constant dense<0.000000e+00> : vector<8x256xf32>
    %34 = tpu.matmul %31, %32, %cst_22 {dimension_numbers = #tpu.dot_dimension_numbers<[1], [0], [0], [1], [0, 0, 1, 1], [], []>} : vector<8x128xbf16>, vector<128x256xbf16>, vector<8x256xf32> -> vector<8x256xf32>
    %35 = vector.broadcast %33 : vector<1x256xf32> to vector<8x256xf32>
    %36 = arith.addf %34, %35 : vector<8x256xf32>
    %37 = arith.truncf %36 : vector<8x256xf32> to vector<8x256xbf16>
    %38 = math.tanh %37 : vector<8x256xbf16>
    %c768_23 = arith.constant 768 : index
    %c0_24 = arith.constant 0 : index
    %39 = vector.load %arg3[%c768_23, %c0_24] : memref<1280x256xbf16, #tpu.memory_space<vmem>>, vector<256x256xbf16>
    %c0_25 = arith.constant 0 : index
    %c1024 = arith.constant 1024 : index
    %40 = vector.load %arg4[%c0_25, %c1024] : memref<1x1536xf32, #tpu.memory_space<vmem>>, vector<1x256xf32>
    %cst_26 = arith.constant dense<0.000000e+00> : vector<8x256xf32>
    %41 = tpu.matmul %38, %39, %cst_26 {dimension_numbers = #tpu.dot_dimension_numbers<[1], [0], [0], [1], [0, 0, 1, 1], [], []>} : vector<8x256xbf16>, vector<256x256xbf16>, vector<8x256xf32> -> vector<8x256xf32>
    %42 = vector.broadcast %40 : vector<1x256xf32> to vector<8x256xf32>
    %43 = arith.addf %41, %42 : vector<8x256xf32>
    %44 = arith.truncf %43 : vector<8x256xf32> to vector<8x256xbf16>
    %45 = math.tanh %44 : vector<8x256xbf16>
    %c1024_27 = arith.constant 1024 : index
    %c0_28 = arith.constant 0 : index
    %46 = vector.load %arg3[%c1024_27, %c0_28] : memref<1280x256xbf16, #tpu.memory_space<vmem>>, vector<256x128xbf16>
    %c0_29 = arith.constant 0 : index
    %c1280 = arith.constant 1280 : index
    %47 = vector.load %arg4[%c0_29, %c1280] : memref<1x1536xf32, #tpu.memory_space<vmem>>, vector<1x128xf32>
    %cst_30 = arith.constant dense<0.000000e+00> : vector<8x128xf32>
    %48 = tpu.matmul %45, %46, %cst_30 {dimension_numbers = #tpu.dot_dimension_numbers<[1], [0], [0], [1], [0, 0, 1, 1], [], []>} : vector<8x256xbf16>, vector<256x128xbf16>, vector<8x128xf32> -> vector<8x128xf32>
    %49 = vector.broadcast %47 : vector<1x128xf32> to vector<8x128xf32>
    %50 = arith.addf %48, %49 : vector<8x128xf32>
    %cst_31 = arith.constant 5.000000e-01 : f32
    %51 = vector.broadcast %cst_31 : f32 to vector<8x128xf32>
    %52 = arith.mulf %51, %50 : vector<8x128xf32>
    %53 = math.tanh %52 : vector<8x128xf32>
    %cst_32 = arith.constant 5.000000e-01 : f32
    %54 = vector.broadcast %cst_32 : f32 to vector<8x128xf32>
    %55 = arith.mulf %54, %53 : vector<8x128xf32>
    %cst_33 = arith.constant 5.000000e-01 : f32
    %56 = vector.broadcast %cst_33 : f32 to vector<8x128xf32>
    %57 = arith.addf %55, %56 : vector<8x128xf32>
    %c0_34 = arith.constant 0 : index
    %c0_35 = arith.constant 0 : index
    %58 = vector.load %arg5[%c0_34, %c0_35] : memref<8x384xf32, #tpu.memory_space<vmem>>, vector<8x128xf32>
    tpu.vector_store %arg5[%c0_34, %c0_35], %25 {strides = array<i32>} : memref<8x384xf32, #tpu.memory_space<vmem>>, vector<8x128xf32>,
    %c0_36 = arith.constant 0 : index
    %c128_37 = arith.constant 128 : index
    %59 = vector.load %arg5[%c0_36, %c128_37] : memref<8x384xf32, #tpu.memory_space<vmem>>, vector<8x128xf32>
    tpu.vector_store %arg5[%c0_36, %c128_37], %27 {strides = array<i32>} : memref<8x384xf32, #tpu.memory_space<vmem>>, vector<8x128xf32>,
    %c0_38 = arith.constant 0 : index
    %c256_39 = arith.constant 256 : index
    %60 = vector.load %arg5[%c0_38, %c256_39] : memref<8x384xf32, #tpu.memory_space<vmem>>, vector<8x128xf32>
    tpu.vector_store %arg5[%c0_38, %c256_39], %57 {strides = array<i32>} : memref<8x384xf32, #tpu.memory_space<vmem>>, vector<8x128xf32>,
    return
  }
  func.func @transform_0(%arg0: i32) -> (i32, i32) {
    %c0_i32 = arith.constant 0 : i32
    %c0_i32_0 = arith.constant 0 : i32
    return %arg0, %c0_i32 : i32, i32
  }
  func.func @transform_1(%arg0: i32) -> (i32, i32) {
    %c0_i32 = arith.constant 0 : i32
    %c0_i32_0 = arith.constant 0 : i32
    return %arg0, %c0_i32 : i32, i32
  }
  func.func @transform_2(%arg0: i32) -> (i32, i32) {
    %c0_i32 = arith.constant 0 : i32
    %c0_i32_0 = arith.constant 0 : i32
    %c0_i32_1 = arith.constant 0 : i32
    return %c0_i32, %c0_i32_0 : i32, i32
  }
  func.func @transform_3(%arg0: i32) -> (i32, i32) {
    %c0_i32 = arith.constant 0 : i32
    %c0_i32_0 = arith.constant 0 : i32
    %c0_i32_1 = arith.constant 0 : i32
    return %c0_i32, %c0_i32_0 : i32, i32
  }
  func.func @transform_4(%arg0: i32) -> (i32, i32) {
    %c0_i32 = arith.constant 0 : i32
    %c0_i32_0 = arith.constant 0 : i32
    return %arg0, %c0_i32 : i32, i32
  }
}

</mosaic_0001>

<llo_original>
// kernel: iwae1_forward.1
$region0: #{iwae1_forward.1}
  #allocation0 [shape = 'u32[]', space=smem, size = 0x4, offset = 0x4, fixed_abs, tag = 'smem constant byte address 0x4 - core index']
  #allocation1 [shape = 'u32[144,128]{1,0:T(1,128)}', space=vmem, size = 0x12000, scoped, tag = 'internal scratch']
  #allocation2 [shape = 'f32[8,128]{1,0:T(8,128)}', space=vmem, size = 0x1000, scoped, tag = 'scratch operand']
  %s0 = inlined_call_operand.hbm [shape: f32[8,64], index: 0, kind: input, shape index: {}]
  %s1 = inlined_call_operand.hbm [shape: f32[8,16], index: 1, kind: input, shape index: {}]
  %s2 = inlined_call_operand.hbm [shape: bf16[1280,256], index: 2, kind: input, shape index: {}]
  %s3 = inlined_call_operand.hbm [shape: f32[1,1536], index: 3, kind: input, shape index: {}]
  %s4 = inlined_call_operand.vmem [shape: f32[8,384], index: 4, kind: output, shape index: {}]
  %s5 = sld [smem:[#allocation0]]
  $region42: #{iwae1_forward.1} parent=0
    _
  %s7 = ssub.s32 1, %s5
  %s8 = scalar_select 0, %s7, %s5
  $region1: #{iwae1_forward.1} parent=0
    #allocation3 [shape = 'u8[4096]{0}', space=vmem, size = 0x1000, scoped, tag = 'input window, operand 0, single buffered']
    #allocation4 [shape = 's32[1]{0}', space=sflag, size = 0x4, scoped, tag = 'scoped memory for iwae1_forward.1']
    #allocation5 [shape = 'u8[4096]{0}', space=vmem, size = 0x1000, scoped, tag = 'input window, operand 1, single buffered']
    #allocation6 [shape = 's32[1]{0}', space=sflag, size = 0x4, scoped, tag = 'scoped memory for iwae1_forward.1']
    #allocation7 [shape = 'u8[655360]{0}', space=vmem, size = 0xa0000, scoped, tag = 'input window, operand 2, single buffered']
    #allocation8 [shape = 'u8[6144]{0}', space=vmem, size = 0x1800, scoped, tag = 'input window, operand 3, single buffered']
    #allocation9 [shape = 's32[1]{0}', space=sflag, size = 0x4, scoped, tag = 'scoped memory for iwae1_forward.1']
    %9 = vsyncpa [#allocation4], 0
    %10 = vsyncpa [#allocation6], 0
    %11 = vsyncpa [#allocation9], 0
    // Predicated region
    $region2: #{iwae1_forward.1} parent=1 // pred_check
      _
    $region3: #{iwae1_forward.1} parent=1 // pred_check_branch
      %13 = sbr.rel (0) target = $region5
    $region4: #{iwae1_forward.1} parent=1 // pred_region
      %s15 = ssub.s32 128, 128
      %16 = vsyncadd [#allocation4], %s15
      %s18 = sshll.u32 [#allocation3], 4
      %s19 = int_to_ptr.vmem [resolvable:$true] %s18
      %21 = dma.hbm_to_vmem [thread:$0]  %s0, 128, %s19, [#allocation4]
    $region5: #{iwae1_forward.1} parent=1 // pred_fallthru
      _
    // Predicated region
    $region6: #{iwae1_forward.1} parent=1 // pred_check
      _
    $region7: #{iwae1_forward.1} parent=1 // pred_check_branch
      %23 = sbr.rel (0) target = $region9
    $region8: #{iwae1_forward.1} parent=1 // pred_region
      %s25 = ssub.s32 128, 128
      %26 = vsyncadd [#allocation6], %s25
      %s28 = sshll.u32 [#allocation5], 4
      %s29 = int_to_ptr.vmem [resolvable:$true] %s28
      %31 = dma.hbm_to_vmem [thread:$0]  %s1, 128, %s29, [#allocation6]
    $region9: #{iwae1_forward.1} parent=1 // pred_fallthru
      _
    // Predicated region
    $region10: #{iwae1_forward.1} parent=1 // pred_check
      _
    $region11: #{iwae1_forward.1} parent=1 // pred_check_branch
      %33 = sbr.rel (0) target = $region13
    $region12: #{iwae1_forward.1} parent=1 // pred_region
      %s35 = ssub.s32 20480, 20480
      %36 = vsyncadd [#allocation6], %s35
      %s37 = sshll.u32 [#allocation7], 4
      %s38 = int_to_ptr.vmem [resolvable:$true] %s37
      %43 = dma.hbm_to_vmem [thread:$0]  %s2, 20480, %s38, [#allocation6], 128, 128, 8
    $region13: #{iwae1_forward.1} parent=1 // pred_fallthru
      _
    // Predicated region
    $region14: #{iwae1_forward.1} parent=1 // pred_check
      _
    $region15: #{iwae1_forward.1} parent=1 // pred_check_branch
      %45 = sbr.rel (0) target = $region17
    $region16: #{iwae1_forward.1} parent=1 // pred_region
      %s47 = ssub.s32 192, 192
      %48 = vsyncadd [#allocation9], %s47
      %s50 = sshll.u32 [#allocation8], 4
      %s51 = int_to_ptr.vmem [resolvable:$true] %s50
      %53 = dma.hbm_to_vmem [thread:$0]  %s3, 192, %s51, [#allocation9]
    $region17: #{iwae1_forward.1} parent=1 // pred_fallthru
      _
    // Predicated region
    $region18: #{iwae1_forward.1} parent=1 // pred_check
      _
    $region19: #{iwae1_forward.1} parent=1 // pred_check_branch
      %55 = sbr.rel (0) target = $region21
    $region20: #{iwae1_forward.1} parent=1 // pred_region
      %56 = dma.done [#allocation4], 128
    $region21: #{iwae1_forward.1} parent=1 // pred_fallthru
      _
    // Predicated region
    $region22: #{iwae1_forward.1} parent=1 // pred_check
      _
    $region23: #{iwae1_forward.1} parent=1 // pred_check_branch
      %58 = sbr.rel (0) target = $region25
    $region24: #{iwae1_forward.1} parent=1 // pred_region
      %59 = dma.done [#allocation6], 128
    $region25: #{iwae1_forward.1} parent=1 // pred_fallthru
      _
    // Predicated region
    $region26: #{iwae1_forward.1} parent=1 // pred_check
      _
    $region27: #{iwae1_forward.1} parent=1 // pred_check_branch
      %61 = sbr.rel (0) target = $region29
    $region28: #{iwae1_forward.1} parent=1 // pred_region
      %62 = dma.done [#allocation6], 20480
    $region29: #{iwae1_forward.1} parent=1 // pred_fallthru
      _
    // Predicated region
    $region30: #{iwae1_forward.1} parent=1 // pred_check
      _
    $region31: #{iwae1_forward.1} parent=1 // pred_check_branch
      %64 = sbr.rel (0) target = $region33
    $region32: #{iwae1_forward.1} parent=1 // pred_region
      %65 = dma.done [#allocation9], 192
    $region33: #{iwae1_forward.1} parent=1 // pred_fallthru
      _
    %67 = vst [vmem:[#allocation2] sm:$0xff] 0.0
    %v68 = vld [vmem:[#allocation5] sm:$0xff]
    %vm69 = vcmask 130048
    %70 = vst.msk [vmem:[#allocation2] sm:$0xff] %vm69, %v68
    %v71 = vld [vmem:[#allocation3] sm:$0xff]
    %v72 = vpack.c.bf16 %v71, %v71
    %v73 = vld [vmem:[#allocation7] sm:$0xff]
    %v74 = vld [vmem:[#allocation7 + $0x8] sm:$0xff]
    %v75 = vld [vmem:[#allocation7 + $0x10] sm:$0xff]
    %v76 = vld [vmem:[#allocation7 + $0x18] sm:$0xff]
    %v77 = vld [vmem:[#allocation7 + $0x20] sm:$0xff]
    %v78 = vld [vmem:[#allocation7 + $0x28] sm:$0xff]
    %v79 = vld [vmem:[#allocation7 + $0x30] sm:$0xff]
    %v80 = vld [vmem:[#allocation7 + $0x38] sm:$0xff]
    %v81 = vld [vmem:[#allocation8] sm:$0x3]
    %v83 = vlaneseq
    %v84 = vshrl.u32 %v83, 7
    %v85 = vsub.s32 0, %v84
    %v86 = vrot.slane %v81, %v85
    %v87 = vlaneseq
    %v88 = vshrl.u32 %v87, 7
    %v89 = vsub.s32 1, %v88
    %v90 = vrot.slane %v81, %v89
    %v101 = vunpack.c.l.b16 %v73
    %v102 = vunpack.c.h.b16 %v73
    %v103 = vunpack.c.l.b16 %v74
    %v104 = vunpack.c.h.b16 %v74
    %v105 = vunpack.c.l.b16 %v75
    %v106 = vunpack.c.h.b16 %v75
    %v107 = vunpack.c.l.b16 %v76
    %v108 = vunpack.c.h.b16 %v76
    %v109 = vunpack.c.l.b16 %v77
    %v110 = vunpack.c.h.b16 %v77
    %v111 = vunpack.c.l.b16 %v78
    %v112 = vunpack.c.h.b16 %v78
    %v113 = vunpack.c.l.b16 %v79
    %v114 = vunpack.c.h.b16 %v79
    %v115 = vunpack.c.l.b16 %v80
    %v116 = vunpack.c.h.b16 %v80
    %v117 = vpack.c.b16 %v103, %v101
    %v118 = vpack.c.b16 %v104, %v102
    %v119 = vpack.c.b16 %v107, %v105
    %v120 = vpack.c.b16 %v108, %v106
    %v121 = vpack.c.b16 %v111, %v109
    %v122 = vpack.c.b16 %v112, %v110
    %v123 = vpack.c.b16 %v115, %v113
    %v124 = vpack.c.b16 %v116, %v114
    %vm133 = vcmask 523264
    %v135 = vsel %vm133, %v72, 0
    %137 = vmatprep.subr.bf16.mxu0 %v118
    %138 = vmatpush1.bf16.msra.mxu0 %v117
    %139 = vmatprep.subr.bf16.mxu0 %v120
    %140 = vmatpush1.bf16.msra.mxu0 %v119
    %141 = vmatprep.subr.bf16.mxu0 %v122
    %142 = vmatpush1.bf16.msra.mxu0 %v121
    %143 = vmatprep.subr.bf16.mxu0 %v124
    %144 = vmatpush1.bf16.msra.mxu0 %v123
    %145 = vmatprep.subr.bf16.mxu0 0
    %146 = vmatpush1.bf16.msra.mxu0 0
    %147 = vmatprep.subr.bf16.mxu0 0
    %148 = vmatpush1.bf16.msra.mxu0 0
    %149 = vmatprep.subr.bf16.mxu0 0
    %150 = vmatpush1.bf16.msra.mxu0 0
    %151 = vmatprep.subr.bf16.mxu0 0
    %152 = vmatpush1.bf16.msra.mxu0 0
    %153 = vmatprep.subr.bf16.mxu0 0
    %154 = vmatpush1.bf16.msra.mxu0 0
    %155 = vmatprep.subr.bf16.mxu0 0
    %156 = vmatpush1.bf16.msra.mxu0 0
    %157 = vmatprep.subr.bf16.mxu0 0
    %158 = vmatpush1.bf16.msra.mxu0 0
    %159 = vmatprep.subr.bf16.mxu0 0
    %160 = vmatpush1.bf16.msra.mxu0 0
    %161 = vmatprep.subr.bf16.mxu0 0
    %162 = vmatpush1.bf16.msra.mxu0 0
    %163 = vmatprep.subr.bf16.mxu0 0
    %164 = vmatpush1.bf16.msra.mxu0 0
    %165 = vmatprep.subr.bf16.mxu0 0
    %166 = vmatpush1.bf16.msra.mxu0 0
    %167 = vmatprep.subr.bf16.mxu0 0
    %168 = vmatpush1.bf16.msra.mxu0 0
    %169 = vmatprep.mubr.bf16.mxu0 0
    %170 = vmatmul.mubr.bf16.gmra.mrb[0].mxu0 %v135
    %v171 = vpop.f32.mrb[0].mxu0
    %v172 = vadd.f32 %v86, %v171
    %v173 = vpop.f32.mrb[0].mxu0
    %v174 = vadd.f32 %v90, %v173
    %v175 = vpop.f32.mrb[0].mxu0
    %v176 = vpop.f32.mrb[0].mxu0
    %177 = vdwg.mxu0
    %v178 = vpack.c.bf16 %v172, %v172
    %v179 = vpack.c.bf16 %v174, %v174
    %v180 = vtanh.bf16.pop %v178
    %v181 = vtanh.bf16.pop %v179
    %v182 = vld [vmem:[#allocation7 + $0x80] sm:$0xff]
    %v183 = vld [vmem:[#allocation7 + $0x88] sm:$0xff]
    %v184 = vld [vmem:[#allocation7 + $0x90] sm:$0xff]
    %v185 = vld [vmem:[#allocation7 + $0x98] sm:$0xff]
    %v186 = vld [vmem:[#allocation7 + $0xa0] sm:$0xff]
    %v187 = vld [vmem:[#allocation7 + $0xa8] sm:$0xff]
    %v188 = vld [vmem:[#allocation7 + $0xb0] sm:$0xff]
    %v189 = vld [vmem:[#allocation7 + $0xb8] sm:$0xff]
    %v190 = vld [vmem:[#allocation7 + $0xc0] sm:$0xff]
    %v191 = vld [vmem:[#allocation7 + $0xc8] sm:$0xff]
    %v192 = vld [vmem:[#allocation7 + $0xd0] sm:$0xff]
    %v193 = vld [vmem:[#allocation7 + $0xd8] sm:$0xff]
    %v194 = vld [vmem:[#allocation7 + $0xe0] sm:$0xff]
    %v195 = vld [vmem:[#allocation7 + $0xe8] sm:$0xff]
    %v196 = vld [vmem:[#allocation7 + $0xf0] sm:$0xff]
    %v197 = vld [vmem:[#allocation7 + $0xf8] sm:$0xff]
    %v198 = vld [vmem:[#allocation7 + $0x100] sm:$0xff]
    %v199 = vld [vmem:[#allocation7 + $0x108] sm:$0xff]
    %v200 = vld [vmem:[#allocation7 + $0x110] sm:$0xff]
    %v201 = vld [vmem:[#allocation7 + $0x118] sm:$0xff]
    %v202 = vld [vmem:[#allocation7 + $0x120] sm:$0xff]
    %v203 = vld [vmem:[#allocation7 + $0x128] sm:$0xff]
    %v204 = vld [vmem:[#allocation7 + $0x130] sm:$0xff]
    %v205 = vld [vmem:[#allocation7 + $0x138] sm:$0xff]
    %v206 = vld [vmem:[#allocation7 + $0x140] sm:$0xff]
    %v207 = vld [vmem:[#allocation7 + $0x148] sm:$0xff]
    %v208 = vld [vmem:[#allocation7 + $0x150] sm:$0xff]
    %v209 = vld [vmem:[#allocation7 + $0x158] sm:$0xff]
    %v210 = vld [vmem:[#allocation7 + $0x160] sm:$0xff]
    %v211 = vld [vmem:[#allocation7 + $0x168] sm:$0xff]
    %v212 = vld [vmem:[#allocation7 + $0x170] sm:$0xff]
    %v213 = vld [vmem:[#allocation7 + $0x178] sm:$0xff]
    %v214 = vld [vmem:[#allocation8 + $0x2] sm:$0x3]
    %v216 = vlaneseq
    %v217 = vshrl.u32 %v216, 7
    %v218 = vsub.s32 0, %v217
    %v219 = vrot.slane %v214, %v218
    %v220 = vlaneseq
    %v221 = vshrl.u32 %v220, 7
    %v222 = vsub.s32 1, %v221
    %v223 = vrot.slane %v214, %v222
    %v258 = vunpack.c.l.b16 %v182
    %v259 = vunpack.c.h.b16 %v182
    %v260 = vunpack.c.l.b16 %v183
    %v261 = vunpack.c.h.b16 %v183
    %v262 = vunpack.c.l.b16 %v184
    %v263 = vunpack.c.h.b16 %v184
    %v264 = vunpack.c.l.b16 %v185
    %v265 = vunpack.c.h.b16 %v185
    %v266 = vunpack.c.l.b16 %v186
    %v267 = vunpack.c.h.b16 %v186
    %v268 = vunpack.c.l.b16 %v187
    %v269 = vunpack.c.h.b16 %v187
    %v270 = vunpack.c.l.b16 %v188
    %v271 = vunpack.c.h.b16 %v188
    %v272 = vunpack.c.l.b16 %v189
    %v273 = vunpack.c.h.b16 %v189
    %v274 = vunpack.c.l.b16 %v190
    %v275 = vunpack.c.h.b16 %v190
    %v276 = vunpack.c.l.b16 %v191
    %v277 = vunpack.c.h.b16 %v191
    %v278 = vunpack.c.l.b16 %v192
    %v279 = vunpack.c.h.b16 %v192
    %v280 = vunpack.c.l.b16 %v193
    %v281 = vunpack.c.h.b16 %v193
    %v282 = vunpack.c.l.b16 %v194
    %v283 = vunpack.c.h.b16 %v194
    %v284 = vunpack.c.l.b16 %v195
    %v285 = vunpack.c.h.b16 %v195
    %v286 = vunpack.c.l.b16 %v196
    %v287 = vunpack.c.h.b16 %v196
    %v288 = vunpack.c.l.b16 %v197
    %v289 = vunpack.c.h.b16 %v197
    %v290 = vunpack.c.l.b16 %v198
    %v291 = vunpack.c.h.b16 %v198
    %v292 = vunpack.c.l.b16 %v199
    %v293 = vunpack.c.h.b16 %v199
    %v294 = vunpack.c.l.b16 %v200
    %v295 = vunpack.c.h.b16 %v200
    %v296 = vunpack.c.l.b16 %v201
    %v297 = vunpack.c.h.b16 %v201
    %v298 = vunpack.c.l.b16 %v202
    %v299 = vunpack.c.h.b16 %v202
    %v300 = vunpack.c.l.b16 %v203
    %v301 = vunpack.c.h.b16 %v203
    %v302 = vunpack.c.l.b16 %v204
    %v303 = vunpack.c.h.b16 %v204
    %v304 = vunpack.c.l.b16 %v205
    %v305 = vunpack.c.h.b16 %v205
    %v306 = vunpack.c.l.b16 %v206
    %v307 = vunpack.c.h.b16 %v206
    %v308 = vunpack.c.l.b16 %v207
    %v309 = vunpack.c.h.b16 %v207
    %v310 = vunpack.c.l.b16 %v208
    %v311 = vunpack.c.h.b16 %v208
    %v312 = vunpack.c.l.b16 %v209
    %v313 = vunpack.c.h.b16 %v209
    %v314 = vunpack.c.l.b16 %v210
    %v315 = vunpack.c.h.b16 %v210
    %v316 = vunpack.c.l.b16 %v211
    %v317 = vunpack.c.h.b16 %v211
    %v318 = vunpack.c.l.b16 %v212
    %v319 = vunpack.c.h.b16 %v212
    %v320 = vunpack.c.l.b16 %v213
    %v321 = vunpack.c.h.b16 %v213
    %v322 = vpack.c.b16 %v260, %v258
    %v323 = vpack.c.b16 %v261, %v259
    %v324 = vpack.c.b16 %v264, %v262
    %v325 = vpack.c.b16 %v265, %v263
    %v326 = vpack.c.b16 %v268, %v266
    %v327 = vpack.c.b16 %v269, %v267
    %v328 = vpack.c.b16 %v272, %v270
    %v329 = vpack.c.b16 %v273, %v271
    %v330 = vpack.c.b16 %v276, %v274
    %v331 = vpack.c.b16 %v277, %v275
    %v332 = vpack.c.b16 %v280, %v278
    %v333 = vpack.c.b16 %v281, %v279
    %v334 = vpack.c.b16 %v284, %v282
    %v335 = vpack.c.b16 %v285, %v283
    %v336 = vpack.c.b16 %v288, %v286
    %v337 = vpack.c.b16 %v289, %v287
    %v338 = vpack.c.b16 %v292, %v290
    %v339 = vpack.c.b16 %v293, %v291
    %v340 = vpack.c.b16 %v296, %v294
    %v341 = vpack.c.b16 %v297, %v295
    %v342 = vpack.c.b16 %v300, %v298
    %v343 = vpack.c.b16 %v301, %v299
    %v344 = vpack.c.b16 %v304, %v302
    %v345 = vpack.c.b16 %v305, %v303
    %v346 = vpack.c.b16 %v308, %v306
    %v347 = vpack.c.b16 %v309, %v307
    %v348 = vpack.c.b16 %v312, %v310
    %v349 = vpack.c.b16 %v313, %v311
    %v350 = vpack.c.b16 %v316, %v314
    %v351 = vpack.c.b16 %v317, %v315
    %v352 = vpack.c.b16 %v320, %v318
    %v353 = vpack.c.b16 %v321, %v319
    %386 = vmatprep.subr.bf16.mxu0 %v323
    %387 = vmatpush1.bf16.msra.mxu0 %v322
    %388 = vmatprep.subr.bf16.mxu0 %v325
    %389 = vmatpush1.bf16.msra.mxu0 %v324
    %390 = vmatprep.subr.bf16.mxu0 %v327
    %391 = vmatpush1.bf16.msra.mxu0 %v326
    %392 = vmatprep.subr.bf16.mxu0 %v329
    %393 = vmatpush1.bf16.msra.mxu0 %v328
    %394 = vmatprep.subr.bf16.mxu0 %v331
    %395 = vmatpush1.bf16.msra.mxu0 %v330
    %396 = vmatprep.subr.bf16.mxu0 %v333
    %397 = vmatpush1.bf16.msra.mxu0 %v332
    %398 = vmatprep.subr.bf16.mxu0 %v335
    %399 = vmatpush1.bf16.msra.mxu0 %v334
    %400 = vmatprep.subr.bf16.mxu0 %v337
    %401 = vmatpush1.bf16.msra.mxu0 %v336
    %402 = vmatprep.subr.bf16.mxu0 %v339
    %403 = vmatpush1.bf16.msra.mxu0 %v338
    %404 = vmatprep.subr.bf16.mxu0 %v341
    %405 = vmatpush1.bf16.msra.mxu0 %v340
    %406 = vmatprep.subr.bf16.mxu0 %v343
    %407 = vmatpush1.bf16.msra.mxu0 %v342
    %408 = vmatprep.subr.bf16.mxu0 %v345
    %409 = vmatpush1.bf16.msra.mxu0 %v344
    %410 = vmatprep.subr.bf16.mxu0 %v347
    %411 = vmatpush1.bf16.msra.mxu0 %v346
    %412 = vmatprep.subr.bf16.mxu0 %v349
    %413 = vmatpush1.bf16.msra.mxu0 %v348
    %414 = vmatprep.subr.bf16.mxu0 %v351
    %415 = vmatpush1.bf16.msra.mxu0 %v350
    %416 = vmatprep.subr.bf16.mxu0 %v353
    %417 = vmatpush1.bf16.msra.mxu0 %v352
    %418 = vmatprep.mubr.bf16.mxu0 %v181
    %419 = vmatmul.mubr.bf16.gmra.mrb[0].mxu0 %v180
    %v420 = vpop.f32.mrb[0].mxu0
    %v421 = vadd.f32 %v219, %v420
    %v422 = vpop.f32.mrb[0].mxu0
    %v423 = vadd.f32 %v223, %v422
    %v424 = vpop.f32.mrb[0].mxu0
    %v425 = vpop.f32.mrb[0].mxu0
    %426 = vdwg.mxu0
    %v427 = vpack.c.bf16 %v421, %v421
    %v428 = vpack.c.bf16 %v423, %v423
    %v429 = vtanh.bf16.pop %v427
    %v430 = vtanh.bf16.pop %v428
    %v431 = vld [vmem:[#allocation7 + $0x180] sm:$0xff]
    %v432 = vld [vmem:[#allocation7 + $0x188] sm:$0xff]
    %v433 = vld [vmem:[#allocation7 + $0x190] sm:$0xff]
    %v434 = vld [vmem:[#allocation7 + $0x198] sm:$0xff]
    %v435 = vld [vmem:[#allocation7 + $0x1a0] sm:$0xff]
    %v436 = vld [vmem:[#allocation7 + $0x1a8] sm:$0xff]
    %v437 = vld [vmem:[#allocation7 + $0x1b0] sm:$0xff]
    %v438 = vld [vmem:[#allocation7 + $0x1b8] sm:$0xff]
    %v439 = vld [vmem:[#allocation7 + $0x1c0] sm:$0xff]
    %v440 = vld [vmem:[#allocation7 + $0x1c8] sm:$0xff]
    %v441 = vld [vmem:[#allocation7 + $0x1d0] sm:$0xff]
    %v442 = vld [vmem:[#allocation7 + $0x1d8] sm:$0xff]
    %v443 = vld [vmem:[#allocation7 + $0x1e0] sm:$0xff]
    %v444 = vld [vmem:[#allocation7 + $0x1e8] sm:$0xff]
    %v445 = vld [vmem:[#allocation7 + $0x1f0] sm:$0xff]
    %v446 = vld [vmem:[#allocation7 + $0x1f8] sm:$0xff]
    %v447 = vld [vmem:[#allocation7 + $0x200] sm:$0xff]
    %v448 = vld [vmem:[#allocation7 + $0x208] sm:$0xff]
    %v449 = vld [vmem:[#allocation7 + $0x210] sm:$0xff]
    %v450 = vld [vmem:[#allocation7 + $0x218] sm:$0xff]
    %v451 = vld [vmem:[#allocation7 + $0x220] sm:$0xff]
    %v452 = vld [vmem:[#allocation7 + $0x228] sm:$0xff]
    %v453 = vld [vmem:[#allocation7 + $0x230] sm:$0xff]
    %v454 = vld [vmem:[#allocation7 + $0x238] sm:$0xff]
    %v455 = vld [vmem:[#allocation7 + $0x240] sm:$0xff]
    %v456 = vld [vmem:[#allocation7 + $0x248] sm:$0xff]
    %v457 = vld [vmem:[#allocation7 + $0x250] sm:$0xff]
    %v458 = vld [vmem:[#allocation7 + $0x258] sm:$0xff]
    %v459 = vld [vmem:[#allocation7 + $0x260] sm:$0xff]
    %v460 = vld [vmem:[#allocation7 + $0x268] sm:$0xff]
    %v461 = vld [vmem:[#allocation7 + $0x270] sm:$0xff]
    %v462 = vld [vmem:[#allocation7 + $0x278] sm:$0xff]
    %v463 = vld [vmem:[#allocation8 + $0x4] sm:$0x3]
    %v465 = vlaneseq
    %v466 = vshrl.u32 %v465, 7
    %v467 = vsub.s32 0, %v466
    %v468 = vrot.slane %v463, %v467
    %v469 = vlaneseq
    %v470 = vshrl.u32 %v469, 7
    %v471 = vsub.s32 1, %v470
    %v472 = vrot.slane %v463, %v471
    %v507 = vunpack.c.l.b16 %v431
    %v508 = vunpack.c.h.b16 %v431
    %v509 = vunpack.c.l.b16 %v432
    %v510 = vunpack.c.h.b16 %v432
    %v511 = vunpack.c.l.b16 %v433
    %v512 = vunpack.c.h.b16 %v433
    %v513 = vunpack.c.l.b16 %v434
    %v514 = vunpack.c.h.b16 %v434
    %v515 = vunpack.c.l.b16 %v435
    %v516 = vunpack.c.h.b16 %v435
    %v517 = vunpack.c.l.b16 %v436
    %v518 = vunpack.c.h.b16 %v436
    %v519 = vunpack.c.l.b16 %v437
    %v520 = vunpack.c.h.b16 %v437
    %v521 = vunpack.c.l.b16 %v438
    %v522 = vunpack.c.h.b16 %v438
    %v523 = vunpack.c.l.b16 %v439
    %v524 = vunpack.c.h.b16 %v439
    %v525 = vunpack.c.l.b16 %v440
    %v526 = vunpack.c.h.b16 %v440
    %v527 = vunpack.c.l.b16 %v441
    %v528 = vunpack.c.h.b16 %v441
    %v529 = vunpack.c.l.b16 %v442
    %v530 = vunpack.c.h.b16 %v442
    %v531 = vunpack.c.l.b16 %v443
    %v532 = vunpack.c.h.b16 %v443
    %v533 = vunpack.c.l.b16 %v444
    %v534 = vunpack.c.h.b16 %v444
    %v535 = vunpack.c.l.b16 %v445
    %v536 = vunpack.c.h.b16 %v445
    %v537 = vunpack.c.l.b16 %v446
    %v538 = vunpack.c.h.b16 %v446
    %v539 = vunpack.c.l.b16 %v447
    %v540 = vunpack.c.h.b16 %v447
    %v541 = vunpack.c.l.b16 %v448
    %v542 = vunpack.c.h.b16 %v448
    %v543 = vunpack.c.l.b16 %v449
    %v544 = vunpack.c.h.b16 %v449
    %v545 = vunpack.c.l.b16 %v450
    %v546 = vunpack.c.h.b16 %v450
    %v547 = vunpack.c.l.b16 %v451
    %v548 = vunpack.c.h.b16 %v451
    %v549 = vunpack.c.l.b16 %v452
    %v550 = vunpack.c.h.b16 %v452
    %v551 = vunpack.c.l.b16 %v453
    %v552 = vunpack.c.h.b16 %v453
    %v553 = vunpack.c.l.b16 %v454
    %v554 = vunpack.c.h.b16 %v454
    %v555 = vunpack.c.l.b16 %v455
    %v556 = vunpack.c.h.b16 %v455
    %v557 = vunpack.c.l.b16 %v456
    %v558 = vunpack.c.h.b16 %v456
    %v559 = vunpack.c.l.b16 %v457
    %v560 = vunpack.c.h.b16 %v457
    %v561 = vunpack.c.l.b16 %v458
    %v562 = vunpack.c.h.b16 %v458
    %v563 = vunpack.c.l.b16 %v459
    %v564 = vunpack.c.h.b16 %v459
    %v565 = vunpack.c.l.b16 %v460
    %v566 = vunpack.c.h.b16 %v460
    %v567 = vunpack.c.l.b16 %v461
    %v568 = vunpack.c.h.b16 %v461
    %v569 = vunpack.c.l.b16 %v462
    %v570 = vunpack.c.h.b16 %v462
    %v571 = vpack.c.b16 %v509, %v507
    %v572 = vpack.c.b16 %v510, %v508
    %v573 = vpack.c.b16 %v513, %v511
    %v574 = vpack.c.b16 %v514, %v512
    %v575 = vpack.c.b16 %v517, %v515
    %v576 = vpack.c.b16 %v518, %v516
    %v577 = vpack.c.b16 %v521, %v519
    %v578 = vpack.c.b16 %v522, %v520
    %v579 = vpack.c.b16 %v525, %v523
    %v580 = vpack.c.b16 %v526, %v524
    %v581 = vpack.c.b16 %v529, %v527
    %v582 = vpack.c.b16 %v530, %v528
    %v583 = vpack.c.b16 %v533, %v531
    %v584 = vpack.c.b16 %v534, %v532
    %v585 = vpack.c.b16 %v537, %v535
    %v586 = vpack.c.b16 %v538, %v536
    %v587 = vpack.c.b16 %v541, %v539
    %v588 = vpack.c.b16 %v542, %v540
    %v589 = vpack.c.b16 %v545, %v543
    %v590 = vpack.c.b16 %v546, %v544
    %v591 = vpack.c.b16 %v549, %v547
    %v592 = vpack.c.b16 %v550, %v548
    %v593 = vpack.c.b16 %v553, %v551
    %v594 = vpack.c.b16 %v554, %v552
    %v595 = vpack.c.b16 %v557, %v555
    %v596 = vpack.c.b16 %v558, %v556
    %v597 = vpack.c.b16 %v561, %v559
    %v598 = vpack.c.b16 %v562, %v560
    %v599 = vpack.c.b16 %v565, %v563
    %v600 = vpack.c.b16 %v566, %v564
    %v601 = vpack.c.b16 %v569, %v567
    %v602 = vpack.c.b16 %v570, %v568
    %635 = vmatprep.subr.bf16.mxu0 %v572
    %636 = vmatpush1.bf16.msra.mxu0 %v571
    %637 = vmatprep.subr.bf16.mxu0 %v574
    %638 = vmatpush1.bf16.msra.mxu0 %v573
    %639 = vmatprep.subr.bf16.mxu0 %v576
    %640 = vmatpush1.bf16.msra.mxu0 %v575
    %641 = vmatprep.subr.bf16.mxu0 %v578
    %642 = vmatpush1.bf16.msra.mxu0 %v577
    %643 = vmatprep.subr.bf16.mxu0 %v580
    %644 = vmatpush1.bf16.msra.mxu0 %v579
    %645 = vmatprep.subr.bf16.mxu0 %v582
    %646 = vmatpush1.bf16.msra.mxu0 %v581
    %647 = vmatprep.subr.bf16.mxu0 %v584
    %648 = vmatpush1.bf16.msra.mxu0 %v583
    %649 = vmatprep.subr.bf16.mxu0 %v586
    %650 = vmatpush1.bf16.msra.mxu0 %v585
    %651 = vmatprep.subr.bf16.mxu0 %v588
    %652 = vmatpush1.bf16.msra.mxu0 %v587
    %653 = vmatprep.subr.bf16.mxu0 %v590
    %654 = vmatpush1.bf16.msra.mxu0 %v589
    %655 = vmatprep.subr.bf16.mxu0 %v592
    %656 = vmatpush1.bf16.msra.mxu0 %v591
    %657 = vmatprep.subr.bf16.mxu0 %v594
    %658 = vmatpush1.bf16.msra.mxu0 %v593
    %659 = vmatprep.subr.bf16.mxu0 %v596
    %660 = vmatpush1.bf16.msra.mxu0 %v595
    %661 = vmatprep.subr.bf16.mxu0 %v598
    %662 = vmatpush1.bf16.msra.mxu0 %v597
    %663 = vmatprep.subr.bf16.mxu0 %v600
    %664 = vmatpush1.bf16.msra.mxu0 %v599
    %665 = vmatprep.subr.bf16.mxu0 %v602
    %666 = vmatpush1.bf16.msra.mxu0 %v601
    %667 = vmatprep.mubr.bf16.mxu0 %v430
    %668 = vmatmul.mubr.bf16.gmra.mrb[0].mxu0 %v429
    %v669 = vpop.f32.mrb[0].mxu0
    %v670 = vadd.f32 %v468, %v669
    %v671 = vpop.f32.mrb[0].mxu0
    %v672 = vadd.f32 %v472, %v671
    %v673 = vpop.f32.mrb[0].mxu0
    %v674 = vpop.f32.mrb[0].mxu0
    %675 = vdwg.mxu0
    %v676 = vmul.f32 %v672, 1.442695
    %v677 = vpow.pop %v676
    %v678 = vld [vmem:[#allocation2] sm:$0xff]
    %v679 = vmul.f32 %v677, %v678
    %v680 = vadd.f32 %v670, %v679
    %v681 = vpack.c.bf16 %v680, %v680
    %v682 = vld [vmem:[#allocation7 + $0x280] sm:$0xff]
    %v683 = vld [vmem:[#allocation7 + $0x288] sm:$0xff]
    %v684 = vld [vmem:[#allocation7 + $0x290] sm:$0xff]
    %v685 = vld [vmem:[#allocation7 + $0x298] sm:$0xff]
    %v686 = vld [vmem:[#allocation7 + $0x2a0] sm:$0xff]
    %v687 = vld [vmem:[#allocation7 + $0x2a8] sm:$0xff]
    %v688 = vld [vmem:[#allocation7 + $0x2b0] sm:$0xff]
    %v689 = vld [vmem:[#allocation7 + $0x2b8] sm:$0xff]
    %v690 = vld [vmem:[#allocation7 + $0x2c0] sm:$0xff]
    %v691 = vld [vmem:[#allocation7 + $0x2c8] sm:$0xff]
    %v692 = vld [vmem:[#allocation7 + $0x2d0] sm:$0xff]
    %v693 = vld [vmem:[#allocation7 + $0x2d8] sm:$0xff]
    %v694 = vld [vmem:[#allocation7 + $0x2e0] sm:$0xff]
    %v695 = vld [vmem:[#allocation7 + $0x2e8] sm:$0xff]
    %v696 = vld [vmem:[#allocation7 + $0x2f0] sm:$0xff]
    %v697 = vld [vmem:[#allocation7 + $0x2f8] sm:$0xff]
    %v698 = vld [vmem:[#allocation8 + $0x6] sm:$0x3]
    %v700 = vlaneseq
    %v701 = vshrl.u32 %v700, 7
    %v702 = vsub.s32 0, %v701
    %v703 = vrot.slane %v698, %v702
    %v704 = vlaneseq
    %v705 = vshrl.u32 %v704, 7
    %v706 = vsub.s32 1, %v705
    %v707 = vrot.slane %v698, %v706
    %v726 = vunpack.c.l.b16 %v682
    %v727 = vunpack.c.h.b16 %v682
    %v728 = vunpack.c.l.b16 %v683
    %v729 = vunpack.c.h.b16 %v683
    %v730 = vunpack.c.l.b16 %v684
    %v731 = vunpack.c.h.b16 %v684
    %v732 = vunpack.c.l.b16 %v685
    %v733 = vunpack.c.h.b16 %v685
    %v734 = vunpack.c.l.b16 %v686
    %v735 = vunpack.c.h.b16 %v686
    %v736 = vunpack.c.l.b16 %v687
    %v737 = vunpack.c.h.b16 %v687
    %v738 = vunpack.c.l.b16 %v688
    %v739 = vunpack.c.h.b16 %v688
    %v740 = vunpack.c.l.b16 %v689
    %v741 = vunpack.c.h.b16 %v689
    %v742 = vunpack.c.l.b16 %v690
    %v743 = vunpack.c.h.b16 %v690
    %v744 = vunpack.c.l.b16 %v691
    %v745 = vunpack.c.h.b16 %v691
    %v746 = vunpack.c.l.b16 %v692
    %v747 = vunpack.c.h.b16 %v692
    %v748 = vunpack.c.l.b16 %v693
    %v749 = vunpack.c.h.b16 %v693
    %v750 = vunpack.c.l.b16 %v694
    %v751 = vunpack.c.h.b16 %v694
    %v752 = vunpack.c.l.b16 %v695
    %v753 = vunpack.c.h.b16 %v695
    %v754 = vunpack.c.l.b16 %v696
    %v755 = vunpack.c.h.b16 %v696
    %v756 = vunpack.c.l.b16 %v697
    %v757 = vunpack.c.h.b16 %v697
    %v758 = vpack.c.b16 %v728, %v726
    %v759 = vpack.c.b16 %v729, %v727
    %v760 = vpack.c.b16 %v732, %v730
    %v761 = vpack.c.b16 %v733, %v731
    %v762 = vpack.c.b16 %v736, %v734
    %v763 = vpack.c.b16 %v737, %v735
    %v764 = vpack.c.b16 %v740, %v738
    %v765 = vpack.c.b16 %v741, %v739
    %v766 = vpack.c.b16 %v744, %v742
    %v767 = vpack.c.b16 %v745, %v743
    %v768 = vpack.c.b16 %v748, %v746
    %v769 = vpack.c.b16 %v749, %v747
    %v770 = vpack.c.b16 %v752, %v750
    %v771 = vpack.c.b16 %v753, %v751
    %v772 = vpack.c.b16 %v756, %v754
    %v773 = vpack.c.b16 %v757, %v755
    %790 = vmatprep.subr.bf16.mxu0 %v759
    %791 = vmatpush1.bf16.msra.mxu0 %v758
    %792 = vmatprep.subr.bf16.mxu0 %v761
    %793 = vmatpush1.bf16.msra.mxu0 %v760
    %794 = vmatprep.subr.bf16.mxu0 %v763
    %795 = vmatpush1.bf16.msra.mxu0 %v762
    %796 = vmatprep.subr.bf16.mxu0 %v765
    %797 = vmatpush1.bf16.msra.mxu0 %v764
    %798 = vmatprep.subr.bf16.mxu0 %v767
    %799 = vmatpush1.bf16.msra.mxu0 %v766
    %800 = vmatprep.subr.bf16.mxu0 %v769
    %801 = vmatpush1.bf16.msra.mxu0 %v768
    %802 = vmatprep.subr.bf16.mxu0 %v771
    %803 = vmatpush1.bf16.msra.mxu0 %v770
    %804 = vmatprep.subr.bf16.mxu0 %v773
    %805 = vmatpush1.bf16.msra.mxu0 %v772
    %806 = vmatprep.subr.bf16.mxu0 0
    %807 = vmatpush1.bf16.msra.mxu0 0
    %808 = vmatprep.subr.bf16.mxu0 0
    %809 = vmatpush1.bf16.msra.mxu0 0
    %810 = vmatprep.subr.bf16.mxu0 0
    %811 = vmatpush1.bf16.msra.mxu0 0
    %812 = vmatprep.subr.bf16.mxu0 0
    %813 = vmatpush1.bf16.msra.mxu0 0
    %814 = vmatprep.subr.bf16.mxu0 0
    %815 = vmatpush1.bf16.msra.mxu0 0
    %816 = vmatprep.subr.bf16.mxu0 0
    %817 = vmatpush1.bf16.msra.mxu0 0
    %818 = vmatprep.subr.bf16.mxu0 0
    %819 = vmatpush1.bf16.msra.mxu0 0
    %820 = vmatprep.subr.bf16.mxu0 0
    %821 = vmatpush1.bf16.msra.mxu0 0
    %822 = vmatprep.mubr.bf16.mxu0 0
    %823 = vmatmul.mubr.bf16.gmra.mrb[0].mxu0 %v681
    %v824 = vpop.f32.mrb[0].mxu0
    %v825 = vadd.f32 %v703, %v824
    %v826 = vpop.f32.mrb[0].mxu0
    %v827 = vadd.f32 %v707, %v826
    %v828 = vpop.f32.mrb[0].mxu0
    %v829 = vpop.f32.mrb[0].mxu0
    %830 = vdwg.mxu0
    %v831 = vpack.c.bf16 %v825, %v825
    %v832 = vpack.c.bf16 %v827, %v827
    %v833 = vtanh.bf16.pop %v831
    %v834 = vtanh.bf16.pop %v832
    %v835 = vld [vmem:[#allocation7 + $0x300] sm:$0xff]
    %v836 = vld [vmem:[#allocation7 + $0x308] sm:$0xff]
    %v837 = vld [vmem:[#allocation7 + $0x310] sm:$0xff]
    %v838 = vld [vmem:[#allocation7 + $0x318] sm:$0xff]
    %v839 = vld [vmem:[#allocation7 + $0x320] sm:$0xff]
    %v840 = vld [vmem:[#allocation7 + $0x328] sm:$0xff]
    %v841 = vld [vmem:[#allocation7 + $0x330] sm:$0xff]
    %v842 = vld [vmem:[#allocation7 + $0x338] sm:$0xff]
    %v843 = vld [vmem:[#allocation7 + $0x340] sm:$0xff]
    %v844 = vld [vmem:[#allocation7 + $0x348] sm:$0xff]
    %v845 = vld [vmem:[#allocation7 + $0x350] sm:$0xff]
    %v846 = vld [vmem:[#allocation7 + $0x358] sm:$0xff]
    %v847 = vld [vmem:[#allocation7 + $0x360] sm:$0xff]
    %v848 = vld [vmem:[#allocation7 + $0x368] sm:$0xff]
    %v849 = vld [vmem:[#allocation7 + $0x370] sm:$0xff]
    %v850 = vld [vmem:[#allocation7 + $0x378] sm:$0xff]
    %v851 = vld [vmem:[#allocation7 + $0x380] sm:$0xff]
    %v852 = vld [vmem:[#allocation7 + $0x388] sm:$0xff]
    %v853 = vld [vmem:[#allocation7 + $0x390] sm:$0xff]
    %v854 = vld [vmem:[#allocation7 + $0x398] sm:$0xff]
    %v855 = vld [vmem:[#allocation7 + $0x3a0] sm:$0xff]
    %v856 = vld [vmem:[#allocation7 + $0x3a8] sm:$0xff]
    %v857 = vld [vmem:[#allocation7 + $0x3b0] sm:$0xff]
    %v858 = vld [vmem:[#allocation7 + $0x3b8] sm:$0xff]
    %v859 = vld [vmem:[#allocation7 + $0x3c0] sm:$0xff]
    %v860 = vld [vmem:[#allocation7 + $0x3c8] sm:$0xff]
    %v861 = vld [vmem:[#allocation7 + $0x3d0] sm:$0xff]
    %v862 = vld [vmem:[#allocation7 + $0x3d8] sm:$0xff]
    %v863 = vld [vmem:[#allocation7 + $0x3e0] sm:$0xff]
    %v864 = vld [vmem:[#allocation7 + $0x3e8] sm:$0xff]
    %v865 = vld [vmem:[#allocation7 + $0x3f0] sm:$0xff]
    %v866 = vld [vmem:[#allocation7 + $0x3f8] sm:$0xff]
    %v867 = vld [vmem:[#allocation8 + $0x8] sm:$0x3]
    %v869 = vlaneseq
    %v870 = vshrl.u32 %v869, 7
    %v871 = vsub.s32 0, %v870
    %v872 = vrot.slane %v867, %v871
    %v873 = vlaneseq
    %v874 = vshrl.u32 %v873, 7
    %v875 = vsub.s32 1, %v874
    %v876 = vrot.slane %v867, %v875
    %v911 = vunpack.c.l.b16 %v835
    %v912 = vunpack.c.h.b16 %v835
    %v913 = vunpack.c.l.b16 %v836
    %v914 = vunpack.c.h.b16 %v836
    %v915 = vunpack.c.l.b16 %v837
    %v916 = vunpack.c.h.b16 %v837
    %v917 = vunpack.c.l.b16 %v838
    %v918 = vunpack.c.h.b16 %v838
    %v919 = vunpack.c.l.b16 %v839
    %v920 = vunpack.c.h.b16 %v839
    %v921 = vunpack.c.l.b16 %v840
    %v922 = vunpack.c.h.b16 %v840
    %v923 = vunpack.c.l.b16 %v841
    %v924 = vunpack.c.h.b16 %v841
    %v925 = vunpack.c.l.b16 %v842
    %v926 = vunpack.c.h.b16 %v842
    %v927 = vunpack.c.l.b16 %v843
    %v928 = vunpack.c.h.b16 %v843
    %v929 = vunpack.c.l.b16 %v844
    %v930 = vunpack.c.h.b16 %v844
    %v931 = vunpack.c.l.b16 %v845
    %v932 = vunpack.c.h.b16 %v845
    %v933 = vunpack.c.l.b16 %v846
    %v934 = vunpack.c.h.b16 %v846
    %v935 = vunpack.c.l.b16 %v847
    %v936 = vunpack.c.h.b16 %v847
    %v937 = vunpack.c.l.b16 %v848
    %v938 = vunpack.c.h.b16 %v848
    %v939 = vunpack.c.l.b16 %v849
    %v940 = vunpack.c.h.b16 %v849
    %v941 = vunpack.c.l.b16 %v850
    %v942 = vunpack.c.h.b16 %v850
    %v943 = vunpack.c.l.b16 %v851
    %v944 = vunpack.c.h.b16 %v851
    %v945 = vunpack.c.l.b16 %v852
    %v946 = vunpack.c.h.b16 %v852
    %v947 = vunpack.c.l.b16 %v853
    %v948 = vunpack.c.h.b16 %v853
    %v949 = vunpack.c.l.b16 %v854
    %v950 = vunpack.c.h.b16 %v854
    %v951 = vunpack.c.l.b16 %v855
    %v952 = vunpack.c.h.b16 %v855
    %v953 = vunpack.c.l.b16 %v856
    %v954 = vunpack.c.h.b16 %v856
    %v955 = vunpack.c.l.b16 %v857
    %v956 = vunpack.c.h.b16 %v857
    %v957 = vunpack.c.l.b16 %v858
    %v958 = vunpack.c.h.b16 %v858
    %v959 = vunpack.c.l.b16 %v859
    %v960 = vunpack.c.h.b16 %v859
    %v961 = vunpack.c.l.b16 %v860
    %v962 = vunpack.c.h.b16 %v860
    %v963 = vunpack.c.l.b16 %v861
    %v964 = vunpack.c.h.b16 %v861
    %v965 = vunpack.c.l.b16 %v862
    %v966 = vunpack.c.h.b16 %v862
    %v967 = vunpack.c.l.b16 %v863
    %v968 = vunpack.c.h.b16 %v863
    %v969 = vunpack.c.l.b16 %v864
    %v970 = vunpack.c.h.b16 %v864
    %v971 = vunpack.c.l.b16 %v865
    %v972 = vunpack.c.h.b16 %v865
    %v973 = vunpack.c.l.b16 %v866
    %v974 = vunpack.c.h.b16 %v866
    %v975 = vpack.c.b16 %v913, %v911
    %v976 = vpack.c.b16 %v914, %v912
    %v977 = vpack.c.b16 %v917, %v915
    %v978 = vpack.c.b16 %v918, %v916
    %v979 = vpack.c.b16 %v921, %v919
    %v980 = vpack.c.b16 %v922, %v920
    %v981 = vpack.c.b16 %v925, %v923
    %v982 = vpack.c.b16 %v926, %v924
    %v983 = vpack.c.b16 %v929, %v927
    %v984 = vpack.c.b16 %v930, %v928
    %v985 = vpack.c.b16 %v933, %v931
    %v986 = vpack.c.b16 %v934, %v932
    %v987 = vpack.c.b16 %v937, %v935
    %v988 = vpack.c.b16 %v938, %v936
    %v989 = vpack.c.b16 %v941, %v939
    %v990 = vpack.c.b16 %v942, %v940
    %v991 = vpack.c.b16 %v945, %v943
    %v992 = vpack.c.b16 %v946, %v944
    %v993 = vpack.c.b16 %v949, %v947
    %v994 = vpack.c.b16 %v950, %v948
    %v995 = vpack.c.b16 %v953, %v951
    %v996 = vpack.c.b16 %v954, %v952
    %v997 = vpack.c.b16 %v957, %v955
    %v998 = vpack.c.b16 %v958, %v956
    %v999 = vpack.c.b16 %v961, %v959
    %v1000 = vpack.c.b16 %v962, %v960
    %v1001 = vpack.c.b16 %v965, %v963
    %v1002 = vpack.c.b16 %v966, %v964
    %v1003 = vpack.c.b16 %v969, %v967
    %v1004 = vpack.c.b16 %v970, %v968
    %v1005 = vpack.c.b16 %v973, %v971
    %v1006 = vpack.c.b16 %v974, %v972
    %1039 = vmatprep.subr.bf16.mxu0 %v976
    %1040 = vmatpush1.bf16.msra.mxu0 %v975
    %1041 = vmatprep.subr.bf16.mxu0 %v978
    %1042 = vmatpush1.bf16.msra.mxu0 %v977
    %1043 = vmatprep.subr.bf16.mxu0 %v980
    %1044 = vmatpush1.bf16.msra.mxu0 %v979
    %1045 = vmatprep.subr.bf16.mxu0 %v982
    %1046 = vmatpush1.bf16.msra.mxu0 %v981
    %1047 = vmatprep.subr.bf16.mxu0 %v984
    %1048 = vmatpush1.bf16.msra.mxu0 %v983
    %1049 = vmatprep.subr.bf16.mxu0 %v986
    %1050 = vmatpush1.bf16.msra.mxu0 %v985
    %1051 = vmatprep.subr.bf16.mxu0 %v988
    %1052 = vmatpush1.bf16.msra.mxu0 %v987
    %1053 = vmatprep.subr.bf16.mxu0 %v990
    %1054 = vmatpush1.bf16.msra.mxu0 %v989
    %1055 = vmatprep.subr.bf16.mxu0 %v992
    %1056 = vmatpush1.bf16.msra.mxu0 %v991
    %1057 = vmatprep.subr.bf16.mxu0 %v994
    %1058 = vmatpush1.bf16.msra.mxu0 %v993
    %1059 = vmatprep.subr.bf16.mxu0 %v996
    %1060 = vmatpush1.bf16.msra.mxu0 %v995
    %1061 = vmatprep.subr.bf16.mxu0 %v998
    %1062 = vmatpush1.bf16.msra.mxu0 %v997
    %1063 = vmatprep.subr.bf16.mxu0 %v1000
    %1064 = vmatpush1.bf16.msra.mxu0 %v999
    %1065 = vmatprep.subr.bf16.mxu0 %v1002
    %1066 = vmatpush1.bf16.msra.mxu0 %v1001
    %1067 = vmatprep.subr.bf16.mxu0 %v1004
    %1068 = vmatpush1.bf16.msra.mxu0 %v1003
    %1069 = vmatprep.subr.bf16.mxu0 %v1006
    %1070 = vmatpush1.bf16.msra.mxu0 %v1005
    %1071 = vmatprep.mubr.bf16.mxu0 %v834
    %1072 = vmatmul.mubr.bf16.gmra.mrb[0].mxu0 %v833
    %v1073 = vpop.f32.mrb[0].mxu0
    %v1074 = vadd.f32 %v872, %v1073
    %v1075 = vpop.f32.mrb[0].mxu0
    %v1076 = vadd.f32 %v876, %v1075
    %v1077 = vpop.f32.mrb[0].mxu0
    %v1078 = vpop.f32.mrb[0].mxu0
    %1079 = vdwg.mxu0
    %v1080 = vpack.c.bf16 %v1074, %v1074
    %v1081 = vpack.c.bf16 %v1076, %v1076
    %v1082 = vtanh.bf16.pop %v1080
    %v1083 = vtanh.bf16.pop %v1081
    %v1084 = vld [vmem:[#allocation7 + $0x400] sm:$0xf]
    %v1085 = vld [vmem:[#allocation7 + $0x408] sm:$0xf]
    %v1086 = vld [vmem:[#allocation7 + $0x410] sm:$0xf]
    %v1087 = vld [vmem:[#allocation7 + $0x418] sm:$0xf]
    %v1088 = vld [vmem:[#allocation7 + $0x420] sm:$0xf]
    %v1089 = vld [vmem:[#allocation7 + $0x428] sm:$0xf]
    %v1090 = vld [vmem:[#allocation7 + $0x430] sm:$0xf]
    %v1091 = vld [vmem:[#allocation7 + $0x438] sm:$0xf]
    %v1092 = vld [vmem:[#allocation7 + $0x440] sm:$0xf]
    %v1093 = vld [vmem:[#allocation7 + $0x448] sm:$0xf]
    %v1094 = vld [vmem:[#allocation7 + $0x450] sm:$0xf]
    %v1095 = vld [vmem:[#allocation7 + $0x458] sm:$0xf]
    %v1096 = vld [vmem:[#allocation7 + $0x460] sm:$0xf]
    %v1097 = vld [vmem:[#allocation7 + $0x468] sm:$0xf]
    %v1098 = vld [vmem:[#allocation7 + $0x470] sm:$0xf]
    %v1099 = vld [vmem:[#allocation7 + $0x478] sm:$0xf]
    %v1100 = vld [vmem:[#allocation7 + $0x480] sm:$0xf]
    %v1101 = vld [vmem:[#allocation7 + $0x488] sm:$0xf]
    %v1102 = vld [vmem:[#allocation7 + $0x490] sm:$0xf]
    %v1103 = vld [vmem:[#allocation7 + $0x498] sm:$0xf]
    %v1104 = vld [vmem:[#allocation7 + $0x4a0] sm:$0xf]
    %v1105 = vld [vmem:[#allocation7 + $0x4a8] sm:$0xf]
    %v1106 = vld [vmem:[#allocation7 + $0x4b0] sm:$0xf]
    %v1107 = vld [vmem:[#allocation7 + $0x4b8] sm:$0xf]
    %v1108 = vld [vmem:[#allocation7 + $0x4c0] sm:$0xf]
    %v1109 = vld [vmem:[#allocation7 + $0x4c8] sm:$0xf]
    %v1110 = vld [vmem:[#allocation7 + $0x4d0] sm:$0xf]
    %v1111 = vld [vmem:[#allocation7 + $0x4d8] sm:$0xf]
    %v1112 = vld [vmem:[#allocation7 + $0x4e0] sm:$0xf]
    %v1113 = vld [vmem:[#allocation7 + $0x4e8] sm:$0xf]
    %v1114 = vld [vmem:[#allocation7 + $0x4f0] sm:$0xf]
    %v1115 = vld [vmem:[#allocation7 + $0x4f8] sm:$0xf]
    %v1116 = vld [vmem:[#allocation8 + $0xa] sm:$0x1]
    %v1118 = vlaneseq
    %v1119 = vshrl.u32 %v1118, 7
    %v1120 = vsub.s32 0, %v1119
    %v1121 = vrot.slane %v1116, %v1120
    %v1155 = vunpack.c.l.b16 %v1084
    %v1156 = vunpack.c.l.b16 %v1085
    %v1157 = vunpack.c.l.b16 %v1086
    %v1158 = vunpack.c.l.b16 %v1087
    %v1159 = vunpack.c.l.b16 %v1088
    %v1160 = vunpack.c.l.b16 %v1089
    %v1161 = vunpack.c.l.b16 %v1090
    %v1162 = vunpack.c.l.b16 %v1091
    %v1163 = vunpack.c.l.b16 %v1092
    %v1164 = vunpack.c.l.b16 %v1093
    %v1165 = vunpack.c.l.b16 %v1094
    %v1166 = vunpack.c.l.b16 %v1095
    %v1167 = vunpack.c.l.b16 %v1096
    %v1168 = vunpack.c.l.b16 %v1097
    %v1169 = vunpack.c.l.b16 %v1098
    %v1170 = vunpack.c.l.b16 %v1099
    %v1171 = vunpack.c.l.b16 %v1100
    %v1172 = vunpack.c.l.b16 %v1101
    %v1173 = vunpack.c.l.b16 %v1102
    %v1174 = vunpack.c.l.b16 %v1103
    %v1175 = vunpack.c.l.b16 %v1104
    %v1176 = vunpack.c.l.b16 %v1105
    %v1177 = vunpack.c.l.b16 %v1106
    %v1178 = vunpack.c.l.b16 %v1107
    %v1179 = vunpack.c.l.b16 %v1108
    %v1180 = vunpack.c.l.b16 %v1109
    %v1181 = vunpack.c.l.b16 %v1110
    %v1182 = vunpack.c.l.b16 %v1111
    %v1183 = vunpack.c.l.b16 %v1112
    %v1184 = vunpack.c.l.b16 %v1113
    %v1185 = vunpack.c.l.b16 %v1114
    %v1186 = vunpack.c.l.b16 %v1115
    %v1187 = vpack.c.b16 %v1156, %v1155
    %v1188 = vpack.c.b16 %v1158, %v1157
    %v1189 = vpack.c.b16 %v1160, %v1159
    %v1190 = vpack.c.b16 %v1162, %v1161
    %v1191 = vpack.c.b16 %v1164, %v1163
    %v1192 = vpack.c.b16 %v1166, %v1165
    %v1193 = vpack.c.b16 %v1168, %v1167
    %v1194 = vpack.c.b16 %v1170, %v1169
    %v1195 = vpack.c.b16 %v1172, %v1171
    %v1196 = vpack.c.b16 %v1174, %v1173
    %v1197 = vpack.c.b16 %v1176, %v1175
    %v1198 = vpack.c.b16 %v1178, %v1177
    %v1199 = vpack.c.b16 %v1180, %v1179
    %v1200 = vpack.c.b16 %v1182, %v1181
    %v1201 = vpack.c.b16 %v1184, %v1183
    %v1202 = vpack.c.b16 %v1186, %v1185
    %1219 = vmatprep.subr.bf16.mxu0 0
    %1220 = vmatpush1.bf16.msra.mxu0 %v1187
    %1221 = vmatprep.subr.bf16.mxu0 0
    %1222 = vmatpush1.bf16.msra.mxu0 %v1188
    %1223 = vmatprep.subr.bf16.mxu0 0
    %1224 = vmatpush1.bf16.msra.mxu0 %v1189
    %1225 = vmatprep.subr.bf16.mxu0 0
    %1226 = vmatpush1.bf16.msra.mxu0 %v1190
    %1227 = vmatprep.subr.bf16.mxu0 0
    %1228 = vmatpush1.bf16.msra.mxu0 %v1191
    %1229 = vmatprep.subr.bf16.mxu0 0
    %1230 = vmatpush1.bf16.msra.mxu0 %v1192
    %1231 = vmatprep.subr.bf16.mxu0 0
    %1232 = vmatpush1.bf16.msra.mxu0 %v1193
    %1233 = vmatprep.subr.bf16.mxu0 0
    %1234 = vmatpush1.bf16.msra.mxu0 %v1194
    %1235 = vmatprep.subr.bf16.mxu0 0
    %1236 = vmatpush1.bf16.msra.mxu0 %v1195
    %1237 = vmatprep.subr.bf16.mxu0 0
    %1238 = vmatpush1.bf16.msra.mxu0 %v1196
    %1239 = vmatprep.subr.bf16.mxu0 0
    %1240 = vmatpush1.bf16.msra.mxu0 %v1197
    %1241 = vmatprep.subr.bf16.mxu0 0
    %1242 = vmatpush1.bf16.msra.mxu0 %v1198
    %1243 = vmatprep.subr.bf16.mxu0 0
    %1244 = vmatpush1.bf16.msra.mxu0 %v1199
    %1245 = vmatprep.subr.bf16.mxu0 0
    %1246 = vmatpush1.bf16.msra.mxu0 %v1200
    %1247 = vmatprep.subr.bf16.mxu0 0
    %1248 = vmatpush1.bf16.msra.mxu0 %v1201
    %1249 = vmatprep.subr.bf16.mxu0 0
    %1250 = vmatpush1.bf16.msra.mxu0 %v1202
    %1251 = vmatprep.mubr.bf16.mxu0 %v1083
    %1252 = vmatmul.mubr.bf16.gmra.mrb[0].mxu0 %v1082
    %v1253 = vpop.f32.mrb[0].mxu0
    %v1254 = vadd.f32 %v1121, %v1253
    %v1255 = vpop.f32.mrb[0].mxu0
    %v1256 = vpop.f32.mrb[0].mxu0
    %v1257 = vpop.f32.mrb[0].mxu0
    %1258 = vdwg.mxu0
    %v1259 = vmul.f32 %v1254, 0.5
    %v1260 = vtanh.pop %v1259
    %v1261 = vmul.f32 %v1260, 0.5
    %v1262 = vadd.f32 %v1261, 0.5
    %1263 = vst [vmem:[%s4] sm:$0xff] %v670
    %1264 = vst [vmem:[%s4 + $0x8] sm:$0xff] %v677
    %1265 = vst [vmem:[%s4 + $0x10] sm:$0xff] %v1262
    // Predicated region
    $region34: #{iwae1_forward.1} parent=1 // pred_check
      _
    $region35: #{iwae1_forward.1} parent=1 // pred_check_branch
      %1267 = sbr.rel (0) target = $region37
    $region36: #{iwae1_forward.1} parent=1 // pred_region
      _
    $region37: #{iwae1_forward.1} parent=1 // pred_fallthru
      _
    // Predicated region
    $region38: #{iwae1_forward.1} parent=1 // pred_check
      _
    $region39: #{iwae1_forward.1} parent=1 // pred_check_branch
      %1269 = sbr.rel (0) target = $region41
    $region40: #{iwae1_forward.1} parent=1 // pred_region
      _
    $region41: #{iwae1_forward.1} parent=1 // pred_fallthru
      _
    %1270 = vsyncpa [#allocation4], 1
    %1271 = vsyncpa [#allocation6], 1
    %1272 = vsyncpa [#allocation9], 1

</llo_original>
